<compile_context>
chip_gen: v7x
topology: tpu7x:2x2x1
jax: 0.10.0
libtpu: 0.0.40
codegen_flags: <defaults>
</compile_context>

<pallas_src>
import functools

import jax
import jax.numpy as jnp
from jax import lax
from jax.experimental import pallas as pl
from jax.experimental.pallas import tpu as pltpu


def _make_kernel(act: str, layer_norm: bool, eps: float):
    def kernel(x_ref, w1_ref, g_ref, b_ref, w2_ref, out_ref):
        x = x_ref[...]                                           # (tm, d_in) bf16
        # Linear(d_in -> d_ff, bias=False), bf16 MXU path, f32 accumulation.
        h = jnp.dot(x, w1_ref[...], preferred_element_type=jnp.float32)
        if layer_norm:
            # One-pass mean/variance (saves a full (tm, d_ff) pass + a reduce).
            mu = jnp.mean(h, axis=-1, keepdims=True)
            var = jnp.mean(h * h, axis=-1, keepdims=True) - mu * mu
            var = jnp.maximum(var, 0.0)
            h = (h - mu) * lax.rsqrt(var + eps)
            h = h * g_ref[...] + b_ref[...]                      # affine LN (f32)
        if act == "relu":
            h = jnp.maximum(h, 0.0)
        elif act == "gelu":
            # PyTorch nn.GELU default is the exact erf form.
            h = jax.nn.gelu(h, approximate=False)
        else:
            raise ValueError(f"unsupported act: {act}")
        # Dropout: inference no-op.
        # Linear(d_ff -> 1, bias=False): contract w2 (1, d_ff) with h (tm, d_ff)
        # on their last dims -> (1, tm).  Lane-dense output row per tile.
        y = lax.dot_general(w2_ref[...], h, (((1,), (1,)), ((), ())),
                            preferred_element_type=jnp.float32)  # (1, tm)
        out_ref[...] = y.reshape(1, 1, -1)
    return kernel


def contribs_net(x, params, *, act="relu", layer_norm=True, eps=1e-5, tm=4096):
    """ContribsNet forward.  x: (..., d_in)  ->  (..., 1) f32."""
    w1, gamma, beta, w2 = params                 # (d_in,d_ff),(1,d_ff),(1,d_ff),(1,d_ff)
    d_in, d_ff = w1.shape
    lead = x.shape[:-1]

    # bf16 x stream halves the dominant HBM traffic (free if upstream already
    # produces bf16).  Post-matmul math stays f32 inside the kernel.
    xf = x.reshape(-1, d_in).astype(jnp.bfloat16)
    n = xf.shape[0]

    w1b = w1.astype(jnp.bfloat16)
    gamma = gamma.astype(jnp.float32)
    beta = beta.astype(jnp.float32)
    w2 = w2.astype(jnp.float32)

    # Row-tile size: a multiple of 8 (sublane constraint) unless a single tile
    # covers the whole (possibly ragged) array.  No host-side padding of x:
    # the tail tile is a Pallas edge block (safe, row-wise ops only).
    assert tm >= 8 and tm % 8 == 0, "tm must be a positive multiple of 8"
    tm_eff = tm if n >= tm else n
    n_tiles = pl.cdiv(n, tm_eff)

    cost = pl.CostEstimate(
        flops=2 * n * d_in * d_ff + 2 * n * d_ff,
        transcendentals=0 if act == "relu" else n * d_ff,
        bytes_accessed=n * d_in * 2 + n * 4 + d_in * d_ff * 2 + 3 * d_ff * 4,
    )

    kernel = _make_kernel(act, layer_norm, eps)
    out = pl.pallas_call(
        kernel,
        out_shape=jax.ShapeDtypeStruct((n_tiles, 1, tm_eff), jnp.float32),
        grid_spec=pltpu.PrefetchScalarGridSpec(
            num_scalar_prefetch=0,
            grid=(n_tiles,),
            in_specs=[
                pl.BlockSpec((tm_eff, d_in), lambda i: (i, 0)),  # x row tile (bf16)
                pl.BlockSpec((d_in, d_ff), lambda i: (0, 0)),    # W1 (resident, bf16)
                pl.BlockSpec((1, d_ff), lambda i: (0, 0)),       # LN gamma (f32)
                pl.BlockSpec((1, d_ff), lambda i: (0, 0)),       # LN beta  (f32)
                pl.BlockSpec((1, d_ff), lambda i: (0, 0)),       # W2 row   (f32)
            ],
            out_specs=pl.BlockSpec((1, 1, tm_eff), lambda i: (i, 0, 0)),
        ),
        compiler_params=pltpu.CompilerParams(
            dimension_semantics=("parallel",)),  # independent row tiles -> both v7x TCs
        cost_estimate=cost,
    )(xf, w1b, gamma, beta, w2)

    return out.reshape(n_tiles * tm_eff)[:n].reshape(lead + (1,))


def init_params(d_in, d_ff, seed=0):
    k = jax.random.split(jax.random.PRNGKey(seed), 4)
    w1 = jax.random.normal(k[0], (d_in, d_ff), jnp.float32) / jnp.sqrt(d_in)
    gamma = 1.0 + 0.1 * jax.random.normal(k[1], (1, d_ff), jnp.float32)
    beta = 0.1 * jax.random.normal(k[2], (1, d_ff), jnp.float32)
    w2 = jax.random.normal(k[3], (1, d_ff), jnp.float32) / jnp.sqrt(d_ff)
    return w1, gamma, beta, w2


def reference(x, params, *, act="relu", layer_norm=True, eps=1e-5):
    """Pure-JAX f32 reference of the forward pass (for sanity checking)."""
    w1, gamma, beta, w2 = params
    h = x.astype(jnp.float32) @ w1
    if layer_norm:
        mu = h.mean(-1, keepdims=True)
        var = ((h - mu) ** 2).mean(-1, keepdims=True)
        h = (h - mu) / jnp.sqrt(var + eps) * gamma + beta
    h = jnp.maximum(h, 0.0) if act == "relu" else jax.nn.gelu(h, approximate=False)
    return h @ w2.T                              # (..., 1)


if __name__ == "__main__":
    batch, seq = 2, 8
    d_input, d_ff = 32, 64

    key = jax.random.PRNGKey(0)
    kx, _ = jax.random.split(key)
    x = jax.random.normal(kx, (batch, seq, d_input), jnp.float32)
    params = init_params(d_input, d_ff, seed=0)

    fwd = jax.jit(functools.partial(contribs_net, act="relu", layer_norm=True))
    out = jax.block_until_ready(fwd(x, params))

    ref = reference(x, params, act="relu", layer_norm=True)
    assert out.shape == ref.shape == (batch, seq, 1)
    # Tolerance reflects bf16 x/W1 operands (f32 accumulation + f32 LN/act).
    assert jnp.allclose(out, ref, rtol=1e-2, atol=1e-2), float(jnp.abs(out - ref).max())
    print("KERNEL_OK")
</pallas_src>

<mosaic_0001>
module attributes {stable_mosaic.version = 11 : i64} {
  func.func @kernel(%arg0: i32, %arg1: memref<16x32xbf16, #tpu.memory_space<vmem>>, %arg2: memref<32x64xbf16, #tpu.memory_space<vmem>>, %arg3: memref<1x64xf32, #tpu.memory_space<vmem>>, %arg4: memref<1x64xf32, #tpu.memory_space<vmem>>, %arg5: memref<1x64xf32, #tpu.memory_space<vmem>>, %arg6: memref<1x1x16xf32, #tpu.memory_space<vmem>>) attributes {dimension_semantics = [#tpu.dimension_semantics<parallel>], iteration_bounds = array<i64: 1>, scalar_prefetch = 0 : i64, scratch_operands = 0 : i64, tpu.core_type = #tpu.core_type<tc>, window_params = [{transform_indices = @transform_0, window_bounds = array<i64: 16, 32>}, {pipeline_mode = #tpu.pipeline_mode<synchronous>, transform_indices = @transform_1, window_bounds = array<i64: 32, 64>}, {pipeline_mode = #tpu.pipeline_mode<synchronous>, transform_indices = @transform_2, window_bounds = array<i64: 1, 64>}, {pipeline_mode = #tpu.pipeline_mode<synchronous>, transform_indices = @transform_3, window_bounds = array<i64: 1, 64>}, {pipeline_mode = #tpu.pipeline_mode<synchronous>, transform_indices = @transform_4, window_bounds = array<i64: 1, 64>}, {transform_indices = @transform_5, window_bounds = array<i64: 1, 1, 16>}]} {
    %c0 = arith.constant 0 : index
    %c0_0 = arith.constant 0 : index
    %0 = vector.load %arg1[%c0, %c0_0] : memref<16x32xbf16, #tpu.memory_space<vmem>>, vector<16x32xbf16>
    %c0_1 = arith.constant 0 : index
    %c0_2 = arith.constant 0 : index
    %1 = vector.load %arg2[%c0_1, %c0_2] : memref<32x64xbf16, #tpu.memory_space<vmem>>, vector<32x64xbf16>
    %cst = arith.constant dense<0.000000e+00> : vector<16x64xf32>
    %2 = tpu.matmul %0, %1, %cst {dimension_numbers = #tpu.dot_dimension_numbers<[1], [0], [0], [1], [0, 0, 1, 1], [], []>} : vector<16x32xbf16>, vector<32x64xbf16>, vector<16x64xf32> -> vector<16x64xf32>
    %cst_3 = arith.constant dense<0.000000e+00> : vector<16xf32>
    %3 = vector.multi_reduction <add>, %2, %cst_3 [1] : vector<16x64xf32> to vector<16xf32>
    %4 = vector.shape_cast %3 : vector<16xf32> to vector<16x1xf32>
    %cst_4 = arith.constant 6.400000e+01 : f32
    %5 = vector.broadcast %cst_4 : f32 to vector<16x1xf32>
    %6 = arith.divf %4, %5 : vector<16x1xf32>
    %7 = arith.mulf %2, %2 : vector<16x64xf32>
    %cst_5 = arith.constant dense<0.000000e+00> : vector<16xf32>
    %8 = vector.multi_reduction <add>, %7, %cst_5 [1] : vector<16x64xf32> to vector<16xf32>
    %9 = vector.shape_cast %8 : vector<16xf32> to vector<16x1xf32>
    %cst_6 = arith.constant 6.400000e+01 : f32
    %10 = vector.broadcast %cst_6 : f32 to vector<16x1xf32>
    %11 = arith.divf %9, %10 : vector<16x1xf32>
    %12 = arith.mulf %6, %6 : vector<16x1xf32>
    %13 = arith.subf %11, %12 : vector<16x1xf32>
    %cst_7 = arith.constant 0.000000e+00 : f32
    %14 = vector.broadcast %cst_7 : f32 to vector<16x1xf32>
    %15 = arith.maximumf %13, %14 : vector<16x1xf32>
    %16 = vector.broadcast %6 : vector<16x1xf32> to vector<16x64xf32>
    %17 = arith.subf %2, %16 : vector<16x64xf32>
    %cst_8 = arith.constant 9.99999974E-6 : f32
    %18 = vector.broadcast %cst_8 : f32 to vector<16x1xf32>
    %19 = arith.addf %15, %18 : vector<16x1xf32>
    %20 = math.rsqrt %19 : vector<16x1xf32>
    %21 = vector.broadcast %20 : vector<16x1xf32> to vector<16x64xf32>
    %22 = arith.mulf %17, %21 : vector<16x64xf32>
    %c0_9 = arith.constant 0 : index
    %c0_10 = arith.constant 0 : index
    %23 = vector.load %arg3[%c0_9, %c0_10] : memref<1x64xf32, #tpu.memory_space<vmem>>, vector<1x64xf32>
    %24 = vector.broadcast %23 : vector<1x64xf32> to vector<16x64xf32>
    %25 = arith.mulf %22, %24 : vector<16x64xf32>
    %c0_11 = arith.constant 0 : index
    %c0_12 = arith.constant 0 : index
    %26 = vector.load %arg4[%c0_11, %c0_12] : memref<1x64xf32, #tpu.memory_space<vmem>>, vector<1x64xf32>
    %27 = vector.broadcast %26 : vector<1x64xf32> to vector<16x64xf32>
    %28 = arith.addf %25, %27 : vector<16x64xf32>
    %cst_13 = arith.constant 0.000000e+00 : f32
    %29 = vector.broadcast %cst_13 : f32 to vector<16x64xf32>
    %30 = arith.maximumf %28, %29 : vector<16x64xf32>
    %c0_14 = arith.constant 0 : index
    %c0_15 = arith.constant 0 : index
    %31 = vector.load %arg5[%c0_14, %c0_15] : memref<1x64xf32, #tpu.memory_space<vmem>>, vector<1x64xf32>
    %cst_16 = arith.constant dense<0.000000e+00> : vector<1x16xf32>
    %32 = tpu.matmul %31, %30, %cst_16 {dimension_numbers = #tpu.dot_dimension_numbers<[1], [1], [0], [0], [0, 0, 1, 0], [], []>} : vector<1x64xf32>, vector<16x64xf32>, vector<1x16xf32> -> vector<1x16xf32>
    %33 = vector.shape_cast %32 : vector<1x16xf32> to vector<1x1x16xf32>
    %c0_17 = arith.constant 0 : index
    %c0_18 = arith.constant 0 : index
    %c0_19 = arith.constant 0 : index
    %34 = vector.load %arg6[%c0_17, %c0_18, %c0_19] : memref<1x1x16xf32, #tpu.memory_space<vmem>>, vector<1x1x16xf32>
    tpu.vector_store %arg6[%c0_17, %c0_18, %c0_19], %33 {strides = array<i32>} : memref<1x1x16xf32, #tpu.memory_space<vmem>>, vector<1x1x16xf32>,
    return
  }
  func.func @transform_0(%arg0: i32) -> (i32, i32) {
    %c0_i32 = arith.constant 0 : i32
    %c0_i32_0 = arith.constant 0 : i32
    return %arg0, %c0_i32 : i32, i32
  }
  func.func @transform_1(%arg0: i32) -> (i32, i32) {
    %c0_i32 = arith.constant 0 : i32
    %c0_i32_0 = arith.constant 0 : i32
    %c0_i32_1 = arith.constant 0 : i32
    return %c0_i32, %c0_i32_0 : i32, i32
  }
  func.func @transform_2(%arg0: i32) -> (i32, i32) {
    %c0_i32 = arith.constant 0 : i32
    %c0_i32_0 = arith.constant 0 : i32
    %c0_i32_1 = arith.constant 0 : i32
    return %c0_i32, %c0_i32_0 : i32, i32
  }
  func.func @transform_3(%arg0: i32) -> (i32, i32) {
    %c0_i32 = arith.constant 0 : i32
    %c0_i32_0 = arith.constant 0 : i32
    %c0_i32_1 = arith.constant 0 : i32
    return %c0_i32, %c0_i32_0 : i32, i32
  }
  func.func @transform_4(%arg0: i32) -> (i32, i32) {
    %c0_i32 = arith.constant 0 : i32
    %c0_i32_0 = arith.constant 0 : i32
    %c0_i32_1 = arith.constant 0 : i32
    return %c0_i32, %c0_i32_0 : i32, i32
  }
  func.func @transform_5(%arg0: i32) -> (i32, i32, i32) {
    %c0_i32 = arith.constant 0 : i32
    %c0_i32_0 = arith.constant 0 : i32
    %c0_i32_1 = arith.constant 0 : i32
    return %arg0, %c0_i32, %c0_i32_0 : i32, i32, i32
  }
}

</mosaic_0001>

<llo_original>
// kernel: contribs_net.1
$region0: #{contribs_net.1}
  #allocation0 [shape = 'u32[]', space=smem, size = 0x4, offset = 0x4, fixed_abs, tag = 'smem constant byte address 0x4 - core index']
  #allocation1 [shape = 'u32[144,128]{1,0:T(1,128)}', space=vmem, size = 0x12000, scoped, tag = 'internal scratch']
  %s0 = inlined_call_operand.vmem [shape: bf16[16,32], index: 0, kind: input, shape index: {}]
  %s1 = inlined_call_operand.vmem [shape: bf16[32,64], index: 1, kind: input, shape index: {}]
  %s2 = inlined_call_operand.vmem [shape: f32[1,64], index: 2, kind: input, shape index: {}]
  %s3 = inlined_call_operand.vmem [shape: f32[1,64], index: 3, kind: input, shape index: {}]
  %s4 = inlined_call_operand.vmem [shape: f32[1,64], index: 4, kind: input, shape index: {}]
  %s5 = inlined_call_operand.vmem [shape: f32[1,1,16], index: 5, kind: output, shape index: {}]
  %s6 = sld [smem:[#allocation0]]
  $region30: #{contribs_net.1} parent=0
    _
  %s8 = ssub.s32 1, %s6
  %s9 = scalar_select 0, %s8, %s6
  // Predicated region
  $region2: #{contribs_net.1} parent=0 // pred_check
    _
  $region3: #{contribs_net.1} parent=0 // pred_check_branch
    %11 = sbr.rel (0) target = $region5
  $region4: #{contribs_net.1} parent=0 // pred_region
    _
  $region5: #{contribs_net.1} parent=0 // pred_fallthru
    _
  // Predicated region
  $region6: #{contribs_net.1} parent=0 // pred_check
    _
  $region7: #{contribs_net.1} parent=0 // pred_check_branch
    %13 = sbr.rel (0) target = $region9
  $region8: #{contribs_net.1} parent=0 // pred_region
    _
  $region9: #{contribs_net.1} parent=0 // pred_fallthru
    _
  // Predicated region
  $region10: #{contribs_net.1} parent=0 // pred_check
    _
  $region11: #{contribs_net.1} parent=0 // pred_check_branch
    %15 = sbr.rel (0) target = $region13
  $region12: #{contribs_net.1} parent=0 // pred_region
    _
  $region13: #{contribs_net.1} parent=0 // pred_fallthru
    _
  // Predicated region
  $region14: #{contribs_net.1} parent=0 // pred_check
    _
  $region15: #{contribs_net.1} parent=0 // pred_check_branch
    %17 = sbr.rel (0) target = $region17
  $region16: #{contribs_net.1} parent=0 // pred_region
    _
  $region17: #{contribs_net.1} parent=0 // pred_fallthru
    _
  // Predicated region
  $region18: #{contribs_net.1} parent=0 // pred_check
    _
  $region19: #{contribs_net.1} parent=0 // pred_check_branch
    %19 = sbr.rel (0) target = $region21
  $region20: #{contribs_net.1} parent=0 // pred_region
    _
  $region21: #{contribs_net.1} parent=0 // pred_fallthru
    _
  %v21 = vld [vmem:[%s0] sm:$0xf]
  %v22 = vld [vmem:[%s0 + $0x4] sm:$0xf]
  %v23 = vld [vmem:[%s1] sm:$0xf]
  %v24 = vld [vmem:[%s1 + $0x4] sm:$0xf]
  %v25 = vld [vmem:[%s1 + $0x8] sm:$0xf]
  %v26 = vld [vmem:[%s1 + $0xc] sm:$0xf]
  %v29 = vunpack.c.l.b16 %v21
  %v30 = vunpack.c.l.b16 %v22
  %v31 = vpack.c.b16 %v30, %v29
  %v36 = vunpack.c.l.b16 %v23
  %v37 = vunpack.c.l.b16 %v24
  %v38 = vunpack.c.l.b16 %v25
  %v39 = vunpack.c.l.b16 %v26
  %v40 = vpack.c.b16 %v37, %v36
  %v41 = vpack.c.b16 %v39, %v38
  %vm44 = vcmask 261120
  %v46 = vsel %vm44, %v31, 0
  %48 = vmatprep.subr.bf16.mxu0 0
  %49 = vmatpush1.bf16.msra.mxu0 %v40
  %50 = vmatprep.subr.bf16.mxu0 0
  %51 = vmatpush1.bf16.msra.mxu0 %v41
  %52 = vmatprep.subr.bf16.mxu0 0
  %53 = vmatpush1.bf16.msra.mxu0 0
  %54 = vmatprep.subr.bf16.mxu0 0
  %55 = vmatpush1.bf16.msra.mxu0 0
  %56 = vmatprep.subr.bf16.mxu0 0
  %57 = vmatpush1.bf16.msra.mxu0 0
  %58 = vmatprep.subr.bf16.mxu0 0
  %59 = vmatpush1.bf16.msra.mxu0 0
  %60 = vmatprep.subr.bf16.mxu0 0
  %61 = vmatpush1.bf16.msra.mxu0 0
  %62 = vmatprep.subr.bf16.mxu0 0
  %63 = vmatpush1.bf16.msra.mxu0 0
  %64 = vmatprep.subr.bf16.mxu0 0
  %65 = vmatpush1.bf16.msra.mxu0 0
  %66 = vmatprep.subr.bf16.mxu0 0
  %67 = vmatpush1.bf16.msra.mxu0 0
  %68 = vmatprep.subr.bf16.mxu0 0
  %69 = vmatpush1.bf16.msra.mxu0 0
  %70 = vmatprep.subr.bf16.mxu0 0
  %71 = vmatpush1.bf16.msra.mxu0 0
  %72 = vmatprep.subr.bf16.mxu0 0
  %73 = vmatpush1.bf16.msra.mxu0 0
  %74 = vmatprep.subr.bf16.mxu0 0
  %75 = vmatpush1.bf16.msra.mxu0 0
  %76 = vmatprep.subr.bf16.mxu0 0
  %77 = vmatpush1.bf16.msra.mxu0 0
  %78 = vmatprep.subr.bf16.mxu0 0
  %79 = vmatpush1.bf16.msra.mxu0 0
  %80 = vmatprep.mubr.bf16.mxu0 0
  %81 = vmatmul.mubr.bf16.gmra.mrb[0].mxu0 %v46
  %v82 = vpop.f32.mrb[0].mxu0
  %v83 = vadd.f32 0.0, %v82
  %v84 = vpop.f32.mrb[0].mxu0
  %v85 = vpop.f32.mrb[0].mxu0
  %v86 = vadd.f32 0.0, %v85
  %v87 = vpop.f32.mrb[0].mxu0
  %88 = vdwg.mxu0
  %vm89 = vcmask 523264
  %v90 = vsel %vm89, %v83, 0.0
  %91 = vadd.xlane.f32.xlu0 %v90
  %v92 = vpop.xlane.xlu0 %91
  %v93 = vsel %vm89, %v86, 0.0
  %94 = vadd.xlane.f32.xlu0 %v93
  %v95 = vpop.xlane.xlu0 %94
  %v96 = vrcp.pop 64.0
  %v97 = vmul.f32 %v92, %v96
  %v98 = vmul.f32 %v95, %v96
  %v99 = vmul.f32 %v83, %v83
  %v100 = vmul.f32 %v86, %v86
  %v101 = vsel %vm89, %v99, 0.0
  %102 = vadd.xlane.f32.xlu0 %v101
  %v103 = vpop.xlane.xlu0 %102
  %v104 = vsel %vm89, %v100, 0.0
  %105 = vadd.xlane.f32.xlu0 %v104
  %v106 = vpop.xlane.xlu0 %105
  %v107 = vmul.f32 %v103, %v96
  %v108 = vmul.f32 %v106, %v96
  %v109 = vmul.f32 %v97, %v97
  %v110 = vmul.f32 %v98, %v98
  %v111 = vsub.f32 %v107, %v109
  %v112 = vsub.f32 %v108, %v110
  %v113 = vmax.f32 %v111, 0.0
  %v114 = vmax.f32 %v112, 0.0
  %v115 = vsub.f32 %v83, %v97
  %v116 = vsub.f32 %v86, %v98
  %v117 = vadd.f32 %v113, 1e-05
  %v118 = vadd.f32 %v114, 1e-05
  %v119 = vrsqrt.pop %v117
  %v120 = vrsqrt.pop %v118
  %v121 = vmul.f32 %v115, %v119
  %v122 = vmul.f32 %v116, %v120
  %v123 = vld [vmem:[%s2] sm:$0x1]
  %v125 = vlaneseq
  %v126 = vshrl.u32 %v125, 7
  %v127 = vsub.s32 0, %v126
  %v128 = vrot.slane %v123, %v127
  %v130 = vmul.f32 %v121, %v128
  %v131 = vmul.f32 %v122, %v128
  %v132 = vld [vmem:[%s3] sm:$0x1]
  %v134 = vlaneseq
  %v135 = vshrl.u32 %v134, 7
  %v136 = vsub.s32 0, %v135
  %v137 = vrot.slane %v132, %v136
  %v139 = vadd.f32 %v130, %v137
  %v140 = vadd.f32 %v131, %v137
  %v141 = vmax.f32 %v139, 0.0
  %v142 = vmax.f32 %v140, 0.0
  %v143 = vld [vmem:[%s4] sm:$0x1]
  %v145 = vsel %vm89, %v143, 0
  %v148 = vsel %vm89, %v141, 0
  %v151 = vsel %vm89, %v142, 0
  %153 = vmatprep.subr.mxu0 0.0
  %154 = vmatpush1.xpose.msra.mxu0 %v148
  %155 = vmatprep.subr.mxu0 0.0
  %156 = vmatpush1.xpose.msra.mxu0 %v151
  %157 = vmatprep.subr.mxu0 0.0
  %158 = vmatpush1.xpose.msra.mxu0 0.0
  %159 = vmatprep.subr.mxu0 0.0
  %160 = vmatpush1.xpose.msra.mxu0 0.0
  %161 = vmatprep.subr.mxu0 0.0
  %162 = vmatpush1.xpose.msra.mxu0 0.0
  %163 = vmatprep.subr.mxu0 0.0
  %164 = vmatpush1.xpose.msra.mxu0 0.0
  %165 = vmatprep.subr.mxu0 0.0
  %166 = vmatpush1.xpose.msra.mxu0 0.0
  %167 = vmatprep.subr.mxu0 0.0
  %168 = vmatpush1.xpose.msra.mxu0 0.0
  %169 = vmatprep.subr.mxu0 0.0
  %170 = vmatpush1.xpose.msra.mxu0 0.0
  %171 = vmatprep.subr.mxu0 0.0
  %172 = vmatpush1.xpose.msra.mxu0 0.0
  %173 = vmatprep.subr.mxu0 0.0
  %174 = vmatpush1.xpose.msra.mxu0 0.0
  %175 = vmatprep.subr.mxu0 0.0
  %176 = vmatpush1.xpose.msra.mxu0 0.0
  %177 = vmatprep.subr.mxu0 0.0
  %178 = vmatpush1.xpose.msra.mxu0 0.0
  %179 = vmatprep.subr.mxu0 0.0
  %180 = vmatpush1.xpose.msra.mxu0 0.0
  %181 = vmatprep.subr.mxu0 0.0
  %182 = vmatpush1.xpose.msra.mxu0 0.0
  %183 = vmatprep.subr.mxu0 0.0
  %184 = vmatpush1.xpose.msra.mxu0 0.0
  %185 = vmatprep.subr.mxu0 0.0
  %186 = vmatpush1.xpose.msra.mxu0 0.0
  %187 = vmatprep.subr.mxu0 0.0
  %188 = vmatpush1.xpose.msra.mxu0 0.0
  %189 = vmatprep.subr.mxu0 0.0
  %190 = vmatpush1.xpose.msra.mxu0 0.0
  %191 = vmatprep.subr.mxu0 0.0
  %192 = vmatpush1.xpose.msra.mxu0 0.0
  %193 = vmatprep.subr.mxu0 0.0
  %194 = vmatpush1.xpose.msra.mxu0 0.0
  %195 = vmatprep.subr.mxu0 0.0
  %196 = vmatpush1.xpose.msra.mxu0 0.0
  %197 = vmatprep.subr.mxu0 0.0
  %198 = vmatpush1.xpose.msra.mxu0 0.0
  %199 = vmatprep.subr.mxu0 0.0
  %200 = vmatpush1.xpose.msra.mxu0 0.0
  %201 = vmatprep.subr.mxu0 0.0
  %202 = vmatpush1.xpose.msra.mxu0 0.0
  %203 = vmatprep.subr.mxu0 0.0
  %204 = vmatpush1.xpose.msra.mxu0 0.0
  %205 = vmatprep.subr.mxu0 0.0
  %206 = vmatpush1.xpose.msra.mxu0 0.0
  %207 = vmatprep.subr.mxu0 0.0
  %208 = vmatpush1.xpose.msra.mxu0 0.0
  %209 = vmatprep.subr.mxu0 0.0
  %210 = vmatpush1.xpose.msra.mxu0 0.0
  %211 = vmatprep.subr.mxu0 0.0
  %212 = vmatpush1.xpose.msra.mxu0 0.0
  %213 = vmatprep.subr.mxu0 0.0
  %214 = vmatpush1.xpose.msra.mxu0 0.0
  %215 = vmatprep.subr.mxu0 0.0
  %216 = vmatpush1.xpose.msra.mxu0 0.0
  %217 = vmatprep.mubr.f32.mxu0 0.0
  %218 = vmatmul.mubr.f32.gmra.mrb[0].mxu0 %v145
  %v219 = vpop.f32.mrb[0].mxu0
  %v220 = vadd.f32 0.0, %v219
  %v221 = vpop.f32.mrb[0].mxu0
  %222 = vdwg.mxu0
  %vm223 = vcmask 122880
  %224 = vst.msk [vmem:[%s5] sm:$0x1] %vm223, %v220
  // Predicated region
  $region22: #{contribs_net.1} parent=0 // pred_check
    _
  $region23: #{contribs_net.1} parent=0 // pred_check_branch
    %226 = sbr.rel (0) target = $region25
  $region24: #{contribs_net.1} parent=0 // pred_region
    _
  $region25: #{contribs_net.1} parent=0 // pred_fallthru
    _
  // Predicated region
  $region26: #{contribs_net.1} parent=0 // pred_check
    _
  $region27: #{contribs_net.1} parent=0 // pred_check_branch
    %228 = sbr.rel (0) target = $region29
  $region28: #{contribs_net.1} parent=0 // pred_region
    _
  $region29: #{contribs_net.1} parent=0 // pred_fallthru
    _

</llo_original>
